<compile_context>
chip_gen: v7x
topology: tpu7x:2x2x1
jax: 0.10.0
libtpu: 0.0.40
codegen_flags: <defaults>
</compile_context>

<pallas_src>
import functools

import jax
import jax.numpy as jnp
from jax import lax
from jax.experimental import pallas as pl
from jax.experimental.pallas import tpu as pltpu


# --------------------------------- the kernel ---------------------------------

def ffn_kernel(x_ref, ln_g_ref, ln_b_ref, w1_ref, b1_ref, w2_ref, b2_ref, o_ref,
               *, d_real, eps, bf16_epilogue):
    # x_ref: (R, Dp) tile of rows in the input dtype. Math below is f32 unless noted.
    x = x_ref[...].astype(jnp.float32)

    # LayerNorm over the *real* feature width. Feature padding is zero, so sums over the
    # padded lane dim equal sums over the real features; divide by d_real, and use the
    # E[x^2] - mean^2 form so padded lanes never pollute the variance.
    inv_d = jnp.float32(1.0 / d_real)
    mean = jnp.sum(x, axis=-1, keepdims=True) * inv_d
    ex2 = jnp.sum(x * x, axis=-1, keepdims=True) * inv_d
    var = ex2 - mean * mean
    h = (x - mean) * lax.rsqrt(var + eps) * ln_g_ref[...] + ln_b_ref[...]

    # Linear 1: bf16 operands, f32 accumulation on the MXU.
    h1 = jnp.dot(h.astype(jnp.bfloat16), w1_ref[...],
                 preferred_element_type=jnp.float32)
    h1 = h1 + b1_ref[...]

    # SiLU (sigmoid goes to the EUP slot). bf16 epilogue on v6e/v7x, f32 on v5e.
    if bf16_epilogue:
        h1 = h1.astype(jnp.bfloat16)
        h1 = h1 * jax.nn.sigmoid(h1)
    else:
        h1 = (h1 * jax.nn.sigmoid(h1)).astype(jnp.bfloat16)

    # Linear 2: bf16 operands, f32 accumulation.
    y = jnp.dot(h1, w2_ref[...], preferred_element_type=jnp.float32)
    y = y + b2_ref[...]

    o_ref[...] = y.astype(o_ref.dtype)


# ---------------------------------- wrapper ------------------------------------

def _round_up(n, m):
    return (n + m - 1) // m * m


def feed_forward(x, params, *, eps=1e-5, max_block_rows=512, bf16_epilogue=None):
    """x: (*, D) array. params: dict from init_params. Returns (*, D) in x.dtype."""
    orig_shape = x.shape
    D = orig_shape[-1]
    assert D == params['d'], "input feature dim does not match params"
    Dp, Hp = params['w1t'].shape

    if bf16_epilogue is None:
        try:
            kind = jax.devices()[0].device_kind.lower()
            bf16_epilogue = not ('v5 lite' in kind or 'v5e' in kind
                                 or 'v5litepod' in kind)
        except Exception:
            bf16_epilogue = True

    x2 = x.reshape(-1, D)                       # native dtype: no f32 upcast in the wrapper
    N = x2.shape[0]
    in_item = x2.dtype.itemsize
    out_item = in_item

    # --- VMEM budget / row-tile selection -------------------------------------------
    weight_bytes = 2 * Dp * Hp * 2              # two bf16 weight matrices
    param_bytes = 4 * (2 * Dp + Hp + Dp)        # f32 LN params + biases
    fixed_bytes = 2 * weight_bytes + param_bytes  # conservative (assume 2 buffers)

    def step_bytes(r):
        io = 2 * r * Dp * (in_item + out_item)           # double-buffered in/out tiles
        tmp = r * Dp * 12 + r * Hp * 8                   # f32/bf16 temporaries in the body
        return io + tmp

    budget = 56 * 1024 * 1024                   # headroom under v7x's 64 MiB per TensorCore

    def fits(r):
        return fixed_bytes + step_bytes(r) <= budget

    N8 = _round_up(max(N, 8), 8)
    target = min(max_block_rows, N8)
    target = max(8, target - target % 8)
    while target > 8 and not fits(target):
        target -= 8

    # Prefer a divisor of N8 near the target so the whole-activation pad is skipped.
    block_rows = target
    n_pad = _round_up(N8, target)
    for cand in range(target, max(8, target // 2) - 1, -8):
        if N8 % cand == 0:
            block_rows, n_pad = cand, N8
            break

    # Give the row grid >= 2 blocks so ("parallel",) can shard across v7x's 2 TensorCores.
    if n_pad // block_rows < 2 and N8 >= 16:
        block_rows = max(8, (block_rows // 2) - (block_rows // 2) % 8)
        n_pad = _round_up(N8, block_rows)

    # --- pad activations only when actually needed -----------------------------------
    # TODO(synk): for very large N with awkward row counts, handle the ragged last tile
    # with a masked store instead of this whole-activation pad.
    if n_pad != N or Dp != D:
        x2 = jnp.pad(x2, ((0, n_pad - N), (0, Dp - D)))

    grid = (n_pad // block_rows,)
    row_spec = pl.BlockSpec((block_rows, Dp), lambda i: (i, 0))

    def resident(shape):
        # Full-array block, constant index_map, single buffer: DMA'd once, 1x VMEM.
        try:
            return pl.BlockSpec(shape, lambda i: (0, 0),
                                pipeline_mode=pl.Buffered(1))
        except (TypeError, AttributeError):
            return pl.BlockSpec(shape, lambda i: (0, 0))

    vmem_limit = min(64 * 1024 * 1024,
                     max(16 * 1024 * 1024,
                         (fixed_bytes + step_bytes(block_rows)) * 3 // 2 + (2 << 20)))

    flops = 2 * n_pad * Dp * Hp * 2             # two (rows x Dp x Hp) matmuls
    transcendentals = n_pad * Hp                # one sigmoid per hidden activation
    bytes_accessed = (n_pad * Dp * (in_item + out_item)
                      + weight_bytes + param_bytes)

    kernel = functools.partial(ffn_kernel, d_real=D, eps=eps,
                               bf16_epilogue=bf16_epilogue)

    out = pl.pallas_call(
        kernel,
        out_shape=jax.ShapeDtypeStruct((n_pad, Dp), x2.dtype),
        grid=grid,
        in_specs=[row_spec,
                  resident((1, Dp)), resident((1, Dp)),
                  resident((Dp, Hp)), resident((1, Hp)),
                  resident((Hp, Dp)), resident((1, Dp))],
        out_specs=row_spec,
        compiler_params=pltpu.CompilerParams(
            dimension_semantics=("parallel",),
            vmem_limit_bytes=int(vmem_limit)),
        cost_estimate=pl.CostEstimate(flops=int(flops),
                                      transcendentals=int(transcendentals),
                                      bytes_accessed=int(bytes_accessed)),
    )(x2, params['ln_g'], params['ln_b'],
      params['w1t'], params['b1'], params['w2t'], params['b2'])

    return out[:N, :D].reshape(orig_shape)


# ------------------------------- parameter init --------------------------------

def init_params(key, D, H):
    """Torch-style Linear weights (out, in), pre-transposed, cast to bf16, and padded so
    both D and H are multiples of 128 (lane-dense MXU operands and output stores)."""
    Dp, Hp = _round_up(D, 128), _round_up(H, 128)
    ks = jax.random.split(key, 4)

    def rnd(k, shape, scale=0.05):
        return jax.random.normal(k, shape, jnp.float32) * scale

    w1 = rnd(ks[0], (H, D))     # torch Linear(D, H).weight
    b1 = rnd(ks[1], (1, H))
    w2 = rnd(ks[2], (D, H))     # torch Linear(H, D).weight
    b2 = rnd(ks[3], (1, D))

    def pad2(a, rows, cols):
        return jnp.pad(a, ((0, rows - a.shape[0]), (0, cols - a.shape[1])))

    return {
        'd': D, 'h': H,
        'ln_g': pad2(jnp.ones((1, D), jnp.float32), 1, Dp),
        'ln_b': pad2(jnp.zeros((1, D), jnp.float32), 1, Dp),
        'w1t': pad2(jnp.transpose(w1), Dp, Hp).astype(jnp.bfloat16),   # (Dp, Hp) bf16
        'b1': pad2(b1, 1, Hp),                                         # (1, Hp) f32
        'w2t': pad2(jnp.transpose(w2), Hp, Dp).astype(jnp.bfloat16),   # (Hp, Dp) bf16
        'b2': pad2(b2, 1, Dp),                                         # (1, Dp) f32
    }


# ------------------------------ pure-JAX reference ------------------------------

def feed_forward_ref(x, params, eps=1e-5):
    D, H = params['d'], params['h']
    x = x.astype(jnp.float32)
    g = params['ln_g'][0, :D]
    b = params['ln_b'][0, :D]
    w1 = params['w1t'][:D, :H].astype(jnp.float32)
    b1 = params['b1'][0, :H]
    w2 = params['w2t'][:H, :D].astype(jnp.float32)
    b2 = params['b2'][0, :D]
    mean = jnp.mean(x, axis=-1, keepdims=True)
    var = jnp.mean((x - mean) ** 2, axis=-1, keepdims=True)
    h = (x - mean) * lax.rsqrt(var + eps) * g + b
    h = h @ w1 + b1
    h = h * jax.nn.sigmoid(h)
    return h @ w2 + b2


# ------------------------------------ main --------------------------------------

if __name__ == "__main__":
    T, B, D = 8, 2, 32        # seq, batch, input_dim  -> input shape (*, D) = (T, B, D)
    H = 64                    # hidden_dim

    key = jax.random.PRNGKey(0)
    kx, kp = jax.random.split(key)
    x = jax.random.normal(kx, (T, B, D), jnp.float32)
    params = init_params(kp, D, H)

    out = feed_forward(x, params)
    out = jax.block_until_ready(out)

    assert out.shape == (T, B, D)
    assert out.dtype == x.dtype
    assert jnp.all(jnp.isfinite(out))

    ref = feed_forward_ref(x, params)
    assert jnp.allclose(out, ref, atol=5e-2, rtol=5e-2)

    print("KERNEL_OK")
</pallas_src>

<mosaic_0001>
module attributes {stable_mosaic.version = 11 : i64} {
  func.func @ffn_kernel(%arg0: i32, %arg1: memref<8x128xf32, #tpu.memory_space<vmem>>, %arg2: memref<1x128xf32, #tpu.memory_space<vmem>>, %arg3: memref<1x128xf32, #tpu.memory_space<vmem>>, %arg4: memref<128x128xbf16, #tpu.memory_space<vmem>>, %arg5: memref<1x128xf32, #tpu.memory_space<vmem>>, %arg6: memref<128x128xbf16, #tpu.memory_space<vmem>>, %arg7: memref<1x128xf32, #tpu.memory_space<vmem>>, %arg8: memref<8x128xf32, #tpu.memory_space<vmem>>) attributes {dimension_semantics = [#tpu.dimension_semantics<parallel>], iteration_bounds = array<i64: 2>, scalar_prefetch = 0 : i64, scratch_operands = 0 : i64, tpu.core_type = #tpu.core_type<tc>, window_params = [{transform_indices = @transform_0, window_bounds = array<i64: 8, 128>}, {pipeline_mode = #tpu.pipeline_mode<synchronous>, transform_indices = @transform_1, window_bounds = array<i64: 1, 128>}, {pipeline_mode = #tpu.pipeline_mode<synchronous>, transform_indices = @transform_2, window_bounds = array<i64: 1, 128>}, {pipeline_mode = #tpu.pipeline_mode<synchronous>, transform_indices = @transform_3, window_bounds = array<i64: 128, 128>}, {pipeline_mode = #tpu.pipeline_mode<synchronous>, transform_indices = @transform_4, window_bounds = array<i64: 1, 128>}, {pipeline_mode = #tpu.pipeline_mode<synchronous>, transform_indices = @transform_5, window_bounds = array<i64: 128, 128>}, {pipeline_mode = #tpu.pipeline_mode<synchronous>, transform_indices = @transform_6, window_bounds = array<i64: 1, 128>}, {transform_indices = @transform_7, window_bounds = array<i64: 8, 128>}]} {
    %c0 = arith.constant 0 : index
    %c0_0 = arith.constant 0 : index
    %0 = vector.load %arg1[%c0, %c0_0] : memref<8x128xf32, #tpu.memory_space<vmem>>, vector<8x128xf32>
    %cst = arith.constant dense<0.000000e+00> : vector<8xf32>
    %1 = vector.multi_reduction <add>, %0, %cst [1] : vector<8x128xf32> to vector<8xf32>
    %2 = vector.shape_cast %1 : vector<8xf32> to vector<8x1xf32>
    %cst_1 = arith.constant 3.125000e-02 : f32
    %3 = vector.broadcast %cst_1 : f32 to vector<8x1xf32>
    %4 = arith.mulf %2, %3 : vector<8x1xf32>
    %5 = arith.mulf %0, %0 : vector<8x128xf32>
    %cst_2 = arith.constant dense<0.000000e+00> : vector<8xf32>
    %6 = vector.multi_reduction <add>, %5, %cst_2 [1] : vector<8x128xf32> to vector<8xf32>
    %7 = vector.shape_cast %6 : vector<8xf32> to vector<8x1xf32>
    %cst_3 = arith.constant 3.125000e-02 : f32
    %8 = vector.broadcast %cst_3 : f32 to vector<8x1xf32>
    %9 = arith.mulf %7, %8 : vector<8x1xf32>
    %10 = arith.mulf %4, %4 : vector<8x1xf32>
    %11 = arith.subf %9, %10 : vector<8x1xf32>
    %12 = vector.broadcast %4 : vector<8x1xf32> to vector<8x128xf32>
    %13 = arith.subf %0, %12 : vector<8x128xf32>
    %cst_4 = arith.constant 9.99999974E-6 : f32
    %14 = vector.broadcast %cst_4 : f32 to vector<8x1xf32>
    %15 = arith.addf %11, %14 : vector<8x1xf32>
    %16 = math.rsqrt %15 : vector<8x1xf32>
    %17 = vector.broadcast %16 : vector<8x1xf32> to vector<8x128xf32>
    %18 = arith.mulf %13, %17 : vector<8x128xf32>
    %c0_5 = arith.constant 0 : index
    %c0_6 = arith.constant 0 : index
    %19 = vector.load %arg2[%c0_5, %c0_6] : memref<1x128xf32, #tpu.memory_space<vmem>>, vector<1x128xf32>
    %20 = vector.broadcast %19 : vector<1x128xf32> to vector<8x128xf32>
    %21 = arith.mulf %18, %20 : vector<8x128xf32>
    %c0_7 = arith.constant 0 : index
    %c0_8 = arith.constant 0 : index
    %22 = vector.load %arg3[%c0_7, %c0_8] : memref<1x128xf32, #tpu.memory_space<vmem>>, vector<1x128xf32>
    %23 = vector.broadcast %22 : vector<1x128xf32> to vector<8x128xf32>
    %24 = arith.addf %21, %23 : vector<8x128xf32>
    %25 = arith.truncf %24 : vector<8x128xf32> to vector<8x128xbf16>
    %c0_9 = arith.constant 0 : index
    %c0_10 = arith.constant 0 : index
    %26 = vector.load %arg4[%c0_9, %c0_10] : memref<128x128xbf16, #tpu.memory_space<vmem>>, vector<128x128xbf16>
    %cst_11 = arith.constant dense<0.000000e+00> : vector<8x128xf32>
    %27 = tpu.matmul %25, %26, %cst_11 {dimension_numbers = #tpu.dot_dimension_numbers<[1], [0], [0], [1], [0, 0, 1, 1], [], []>} : vector<8x128xbf16>, vector<128x128xbf16>, vector<8x128xf32> -> vector<8x128xf32>
    %c0_12 = arith.constant 0 : index
    %c0_13 = arith.constant 0 : index
    %28 = vector.load %arg5[%c0_12, %c0_13] : memref<1x128xf32, #tpu.memory_space<vmem>>, vector<1x128xf32>
    %29 = vector.broadcast %28 : vector<1x128xf32> to vector<8x128xf32>
    %30 = arith.addf %27, %29 : vector<8x128xf32>
    %31 = arith.truncf %30 : vector<8x128xf32> to vector<8x128xbf16>
    %32 = arith.negf %31 : vector<8x128xbf16>
    %33 = math.exp %32 : vector<8x128xbf16>
    %cst_14 = arith.constant 1.000000e+00 : bf16
    %34 = vector.broadcast %cst_14 : bf16 to vector<8x128xbf16>
    %35 = arith.addf %34, %33 : vector<8x128xbf16>
    %36 = arith.divf %34, %35 : vector<8x128xbf16>
    %37 = arith.mulf %31, %36 : vector<8x128xbf16>
    %c0_15 = arith.constant 0 : index
    %c0_16 = arith.constant 0 : index
    %38 = vector.load %arg6[%c0_15, %c0_16] : memref<128x128xbf16, #tpu.memory_space<vmem>>, vector<128x128xbf16>
    %cst_17 = arith.constant dense<0.000000e+00> : vector<8x128xf32>
    %39 = tpu.matmul %37, %38, %cst_17 {dimension_numbers = #tpu.dot_dimension_numbers<[1], [0], [0], [1], [0, 0, 1, 1], [], []>} : vector<8x128xbf16>, vector<128x128xbf16>, vector<8x128xf32> -> vector<8x128xf32>
    %c0_18 = arith.constant 0 : index
    %c0_19 = arith.constant 0 : index
    %40 = vector.load %arg7[%c0_18, %c0_19] : memref<1x128xf32, #tpu.memory_space<vmem>>, vector<1x128xf32>
    %41 = vector.broadcast %40 : vector<1x128xf32> to vector<8x128xf32>
    %42 = arith.addf %39, %41 : vector<8x128xf32>
    %c0_20 = arith.constant 0 : index
    %c0_21 = arith.constant 0 : index
    %43 = vector.load %arg8[%c0_20, %c0_21] : memref<8x128xf32, #tpu.memory_space<vmem>>, vector<8x128xf32>
    tpu.vector_store %arg8[%c0_20, %c0_21], %42 {strides = array<i32>} : memref<8x128xf32, #tpu.memory_space<vmem>>, vector<8x128xf32>,
    return
  }
  func.func @transform_0(%arg0: i32) -> (i32, i32) {
    %c0_i32 = arith.constant 0 : i32
    %c0_i32_0 = arith.constant 0 : i32
    return %arg0, %c0_i32 : i32, i32
  }
  func.func @transform_1(%arg0: i32) -> (i32, i32) {
    %c0_i32 = arith.constant 0 : i32
    %c0_i32_0 = arith.constant 0 : i32
    %c0_i32_1 = arith.constant 0 : i32
    return %c0_i32, %c0_i32_0 : i32, i32
  }
  func.func @transform_2(%arg0: i32) -> (i32, i32) {
    %c0_i32 = arith.constant 0 : i32
    %c0_i32_0 = arith.constant 0 : i32
    %c0_i32_1 = arith.constant 0 : i32
    return %c0_i32, %c0_i32_0 : i32, i32
  }
  func.func @transform_3(%arg0: i32) -> (i32, i32) {
    %c0_i32 = arith.constant 0 : i32
    %c0_i32_0 = arith.constant 0 : i32
    %c0_i32_1 = arith.constant 0 : i32
    return %c0_i32, %c0_i32_0 : i32, i32
  }
  func.func @transform_4(%arg0: i32) -> (i32, i32) {
    %c0_i32 = arith.constant 0 : i32
    %c0_i32_0 = arith.constant 0 : i32
    %c0_i32_1 = arith.constant 0 : i32
    return %c0_i32, %c0_i32_0 : i32, i32
  }
  func.func @transform_5(%arg0: i32) -> (i32, i32) {
    %c0_i32 = arith.constant 0 : i32
    %c0_i32_0 = arith.constant 0 : i32
    %c0_i32_1 = arith.constant 0 : i32
    return %c0_i32, %c0_i32_0 : i32, i32
  }
  func.func @transform_6(%arg0: i32) -> (i32, i32) {
    %c0_i32 = arith.constant 0 : i32
    %c0_i32_0 = arith.constant 0 : i32
    %c0_i32_1 = arith.constant 0 : i32
    return %c0_i32, %c0_i32_0 : i32, i32
  }
  func.func @transform_7(%arg0: i32) -> (i32, i32) {
    %c0_i32 = arith.constant 0 : i32
    %c0_i32_0 = arith.constant 0 : i32
    return %arg0, %c0_i32 : i32, i32
  }
}

</mosaic_0001>

<llo_original>
// kernel: tpu_custom_call.1
$region0: #{tpu_custom_call.1}
  #allocation0 [shape = 'u32[]', space=smem, size = 0x4, offset = 0x4, fixed_abs, tag = 'smem constant byte address 0x4 - core index']
  #allocation1 [shape = 'u32[144,128]{1,0:T(1,128)}', space=vmem, size = 0x12000, scoped, tag = 'internal scratch']
  %s0 = inlined_call_operand.hbm [shape: f32[16,128], index: 0, kind: input, shape index: {}]
  %s1 = inlined_call_operand.vmem [shape: f32[1,128], index: 1, kind: input, shape index: {}]
  %s2 = inlined_call_operand.vmem [shape: f32[1,128], index: 2, kind: input, shape index: {}]
  %s3 = inlined_call_operand.hbm [shape: bf16[128,128], index: 3, kind: input, shape index: {}]
  %s4 = inlined_call_operand.vmem [shape: f32[1,128], index: 4, kind: input, shape index: {}]
  %s5 = inlined_call_operand.hbm [shape: bf16[128,128], index: 5, kind: input, shape index: {}]
  %s6 = inlined_call_operand.vmem [shape: f32[1,128], index: 6, kind: input, shape index: {}]
  %s7 = inlined_call_operand.hbm [shape: f32[16,128], index: 7, kind: output, shape index: {}]
  %s8 = sld [smem:[#allocation0]]
  $region73: #{tpu_custom_call.1} parent=0
    _
  %s10 = ssub.s32 1, %s8
  %s11 = scalar_select 0, %s10, %s8
  $region1: #{tpu_custom_call.1} parent=0
    #allocation2 [shape = 'u8[8192]{0}', space=vmem, size = 0x2000, scoped, tag = 'input window, operand 0']
    #allocation3 [shape = 's32[2]{0}', space=sflag, size = 0x8, scoped, tag = 'scoped memory for tpu_custom_call.1']
    #allocation4 [shape = 's32[2]{0}', space=sflag, size = 0x8, scoped, tag = 'scoped memory for tpu_custom_call.1']
    #allocation5 [shape = 'u8[32768]{0}', space=vmem, size = 0x8000, scoped, tag = 'input window, operand 3, single buffered']
    #allocation6 [shape = 's32[1]{0}', space=sflag, size = 0x4, scoped, tag = 'scoped memory for tpu_custom_call.1']
    #allocation7 [shape = 'u8[32768]{0}', space=vmem, size = 0x8000, scoped, tag = 'input window, operand 5, single buffered']
    #allocation8 [shape = 'u8[8192]{0}', space=vmem, size = 0x2000, scoped, tag = 'output window, operand 0']
    %12 = vsyncpa [#allocation3], 0
    %s13 = scalar_lea.sflag [#allocation3], 1
    %14 = vsyncpa %s13, 0
    %15 = vsyncpa [#allocation6], 0
    %16 = vsyncpa [#allocation4], 0
    %s17 = scalar_lea.sflag [#allocation4], 1
    %18 = vsyncpa %s17, 0
    loop: start=0, step=1, limit=4
    $region2: #{tpu_custom_call.1} parent=1 // loop_pre_header
      _
    $region3: #{tpu_custom_call.1} parent=1 // loop_header
      %s20 = sphi 0, %s24
      %p21 = scmp.ge.s32.totalorder %s20, 4
      %s30 = sphi 0, %s32
      %s33 = sphi 0, %s30
      %s34 = sphi 0, %s33
      %s50 = sphi 0, %s34
      %s54 = sphi 0, %s54
      %s56 = sphi 0, %s54
      %s57 = sphi 0, %s56
      %s71 = sphi 0, %s57
      %s75 = sphi 0, %s75
      %s77 = sphi 0, %s75
      %s78 = sphi 0, %s77
      %s92 = sphi 0, %s78
      %s96 = sphi 0, %s96
      %s98 = sphi 0, %s96
      %s99 = sphi 0, %s98
      %s113 = sphi 0, %s99
      %s117 = sphi 0, %s117
      %s119 = sphi 0, %s117
      %s120 = sphi 0, %s119
      %s134 = sphi 0, %s120
      %s138 = sphi 0, %s138
      %s140 = sphi 0, %s138
      %s141 = sphi 0, %s140
      %s155 = sphi 0, %s141
      %s159 = sphi 0, %s159
      %s161 = sphi 0, %s159
      %s162 = sphi 0, %s161
      %s176 = sphi 0, %s162
      %s182 = sphi 0, %s184
      %s185 = sphi 0, %s182
      %s186 = sphi 0, %s185
      %s202 = sphi 0, %s186
    $region4: #{tpu_custom_call.1} parent=1 // loop_header_branch
      %23 = sbr.rel (%p21) target = $region8
    $region5: #{tpu_custom_call.1} parent=1 // loop_body
      %s25 = ssub.s32 %s20, 1
      %s26 = ssub.s32 %s20, 2
      %s27 = sadd.s32 %s20, 1
      %s28 = ssub.s32 %s20, %s27
      %p29 = scmp.eq.s32.totalorder %s28, 0
      %s31 = sadd.s32 %s30, 1
      %s32 = scalar_select %p29, %s30, %s31
      %p35 = pneg %p29
      %p36 = scmp.eq.s32.totalorder %s20, 1
      %p37 = por %p35, %p36
      %p38 = scmp.ne.s32.totalorder %s30, %s33
      %p39 = scmp.eq.s32.totalorder %s20, 0
      %p40 = por %p38, %p39
      %p41 = scmp.ne.s32.totalorder %s30, %s33
      %p42 = scmp.eq.s32.totalorder %s25, 1
      %p43 = por %p41, %p42
      %p44 = scmp.ne.s32.totalorder %s33, %s34
      %p45 = scmp.eq.s32.totalorder %s25, 0
      %p46 = por %p44, %p45
      %p47 = scmp.ne.s32.totalorder %s33, %s34
      %p48 = scmp.eq.s32.totalorder %s26, 1
      %p49 = por %p47, %p48
      %p51 = scmp.ne.s32.totalorder %s34, %s50
      %p52 = scmp.eq.s32.totalorder %s26, 0
      %p53 = por %p51, %p52
      %s55 = sadd.s32 %s54, 1
      %p58 = scmp.eq.s32.totalorder %s20, 1
      %p59 = scmp.ne.s32.totalorder %s54, %s56
      %p60 = scmp.eq.s32.totalorder %s20, 0
      %p61 = por %p59, %p60
      %p62 = scmp.ne.s32.totalorder %s54, %s56
      %p63 = scmp.eq.s32.totalorder %s25, 1
      %p64 = por %p62, %p63
      %p65 = scmp.ne.s32.totalorder %s56, %s57
      %p66 = scmp.eq.s32.totalorder %s25, 0
      %p67 = por %p65, %p66
      %p68 = scmp.ne.s32.totalorder %s56, %s57
      %p69 = scmp.eq.s32.totalorder %s26, 1
      %p70 = por %p68, %p69
      %p72 = scmp.ne.s32.totalorder %s57, %s71
      %p73 = scmp.eq.s32.totalorder %s26, 0
      %p74 = por %p72, %p73
      %s76 = sadd.s32 %s75, 1
      %p79 = scmp.eq.s32.totalorder %s20, 1
      %p80 = scmp.ne.s32.totalorder %s75, %s77
      %p81 = scmp.eq.s32.totalorder %s20, 0
      %p82 = por %p80, %p81
      %p83 = scmp.ne.s32.totalorder %s75, %s77
      %p84 = scmp.eq.s32.totalorder %s25, 1
      %p85 = por %p83, %p84
      %p86 = scmp.ne.s32.totalorder %s77, %s78
      %p87 = scmp.eq.s32.totalorder %s25, 0
      %p88 = por %p86, %p87
      %p89 = scmp.ne.s32.totalorder %s77, %s78
      %p90 = scmp.eq.s32.totalorder %s26, 1
      %p91 = por %p89, %p90
      %p93 = scmp.ne.s32.totalorder %s78, %s92
      %p94 = scmp.eq.s32.totalorder %s26, 0
      %p95 = por %p93, %p94
      %s97 = sadd.s32 %s96, 1
      %p100 = scmp.eq.s32.totalorder %s20, 1
      %p101 = scmp.ne.s32.totalorder %s96, %s98
      %p102 = scmp.eq.s32.totalorder %s20, 0
      %p103 = por %p101, %p102
      %p104 = scmp.ne.s32.totalorder %s96, %s98
      %p105 = scmp.eq.s32.totalorder %s25, 1
      %p106 = por %p104, %p105
      %p107 = scmp.ne.s32.totalorder %s98, %s99
      %p108 = scmp.eq.s32.totalorder %s25, 0
      %p109 = por %p107, %p108
      %p110 = scmp.ne.s32.totalorder %s98, %s99
      %p111 = scmp.eq.s32.totalorder %s26, 1
      %p112 = por %p110, %p111
      %p114 = scmp.ne.s32.totalorder %s99, %s113
      %p115 = scmp.eq.s32.totalorder %s26, 0
      %p116 = por %p114, %p115
      %s118 = sadd.s32 %s117, 1
      %p121 = scmp.eq.s32.totalorder %s20, 1
      %p122 = scmp.ne.s32.totalorder %s117, %s119
      %p123 = scmp.eq.s32.totalorder %s20, 0
      %p124 = por %p122, %p123
      %p125 = scmp.ne.s32.totalorder %s117, %s119
      %p126 = scmp.eq.s32.totalorder %s25, 1
      %p127 = por %p125, %p126
      %p128 = scmp.ne.s32.totalorder %s119, %s120
      %p129 = scmp.eq.s32.totalorder %s25, 0
      %p130 = por %p128, %p129
      %p131 = scmp.ne.s32.totalorder %s119, %s120
      %p132 = scmp.eq.s32.totalorder %s26, 1
      %p133 = por %p131, %p132
      %p135 = scmp.ne.s32.totalorder %s120, %s134
      %p136 = scmp.eq.s32.totalorder %s26, 0
      %p137 = por %p135, %p136
      %s139 = sadd.s32 %s138, 1
      %p142 = scmp.eq.s32.totalorder %s20, 1
      %p143 = scmp.ne.s32.totalorder %s138, %s140
      %p144 = scmp.eq.s32.totalorder %s20, 0
      %p145 = por %p143, %p144
      %p146 = scmp.ne.s32.totalorder %s138, %s140
      %p147 = scmp.eq.s32.totalorder %s25, 1
      %p148 = por %p146, %p147
      %p149 = scmp.ne.s32.totalorder %s140, %s141
      %p150 = scmp.eq.s32.totalorder %s25, 0
      %p151 = por %p149, %p150
      %p152 = scmp.ne.s32.totalorder %s140, %s141
      %p153 = scmp.eq.s32.totalorder %s26, 1
      %p154 = por %p152, %p153
      %p156 = scmp.ne.s32.totalorder %s141, %s155
      %p157 = scmp.eq.s32.totalorder %s26, 0
      %p158 = por %p156, %p157
      %s160 = sadd.s32 %s159, 1
      %p163 = scmp.eq.s32.totalorder %s20, 1
      %p164 = scmp.ne.s32.totalorder %s159, %s161
      %p165 = scmp.eq.s32.totalorder %s20, 0
      %p166 = por %p164, %p165
      %p167 = scmp.ne.s32.totalorder %s159, %s161
      %p168 = scmp.eq.s32.totalorder %s25, 1
      %p169 = por %p167, %p168
      %p170 = scmp.ne.s32.totalorder %s161, %s162
      %p171 = scmp.eq.s32.totalorder %s25, 0
      %p172 = por %p170, %p171
      %p173 = scmp.ne.s32.totalorder %s161, %s162
      %p174 = scmp.eq.s32.totalorder %s26, 1
      %p175 = por %p173, %p174
      %p177 = scmp.ne.s32.totalorder %s162, %s176
      %p178 = scmp.eq.s32.totalorder %s26, 0
      %p179 = por %p177, %p178
      %s180 = ssub.s32 %s20, %s27
      %p181 = scmp.eq.s32.totalorder %s180, 0
      %s183 = sadd.s32 %s182, 1
      %s184 = scalar_select %p181, %s182, %s183
      %p187 = pneg %p181
      %p188 = scmp.eq.s32.totalorder %s20, 1
      %p189 = por %p187, %p188
      %p190 = scmp.ne.s32.totalorder %s182, %s185
      %p191 = scmp.eq.s32.totalorder %s20, 0
      %p192 = por %p190, %p191
      %p193 = scmp.ne.s32.totalorder %s182, %s185
      %p194 = scmp.eq.s32.totalorder %s25, 1
      %p195 = por %p193, %p194
      %p196 = scmp.ne.s32.totalorder %s185, %s186
      %p197 = scmp.eq.s32.totalorder %s25, 0
      %p198 = por %p196, %p197
      %p199 = scmp.ne.s32.totalorder %s185, %s186
      %p200 = scmp.eq.s32.totalorder %s26, 1
      %p201 = por %p199, %p200
      %p203 = scmp.ne.s32.totalorder %s186, %s202
      %p204 = scmp.eq.s32.totalorder %s26, 0
      %p205 = por %p203, %p204
      %p206 = scmp.le.s32.totalorder 1, %s20
      %p207 = scmp.lt.s32.totalorder %s20, 3
      %p208 = pnand %p206, %p207
      %p209 = pneg %p208
      // Predicated region
      $region9: #{tpu_custom_call.1} parent=5 // pred_check
        _
      $region10: #{tpu_custom_call.1} parent=5 // pred_check_branch
        %211 = sbr.rel (%p208) target = $region12
      $region11: #{tpu_custom_call.1} parent=5 // pred_region
        %s212 = ssub.s32 %s20, 1
        // Predicated region
        $region13: #{tpu_custom_call.1} parent=11 // pred_check
          %p213 = pneg %p67
        $region14: #{tpu_custom_call.1} parent=11 // pred_check_branch
          %215 = sbr.rel (%p213) target = $region16
        $region15: #{tpu_custom_call.1} parent=11 // pred_region
          _
        $region16: #{tpu_custom_call.1} parent=11 // pred_fallthru
          _
        // Predicated region
        $region17: #{tpu_custom_call.1} parent=11 // pred_check
          %p216 = pneg %p88
        $region18: #{tpu_custom_call.1} parent=11 // pred_check_branch
          %218 = sbr.rel (%p216) target = $region20
        $region19: #{tpu_custom_call.1} parent=11 // pred_region
          _
        $region20: #{tpu_custom_call.1} parent=11 // pred_fallthru
          _
        // Predicated region
        $region21: #{tpu_custom_call.1} parent=11 // pred_check
          %p219 = pneg %p109
        $region22: #{tpu_custom_call.1} parent=11 // pred_check_branch
          %221 = sbr.rel (%p219) target = $region24
        $region23: #{tpu_custom_call.1} parent=11 // pred_region
          %s223 = ssub.s32 1024, 1024
          %224 = vsyncadd [#allocation6], %s223
          %s225 = sshll.u32 [#allocation5], 4
          %s226 = int_to_ptr.vmem [resolvable:$true] %s225
          %231 = dma.hbm_to_vmem [thread:$0]  %s3, 1024, %s226, [#allocation6], 64, 64, 4
        $region24: #{tpu_custom_call.1} parent=11 // pred_fallthru
          _
        // Predicated region
        $region25: #{tpu_custom_call.1} parent=11 // pred_check
          %p232 = pneg %p130
        $region26: #{tpu_custom_call.1} parent=11 // pred_check_branch
          %234 = sbr.rel (%p232) target = $region28
        $region27: #{tpu_custom_call.1} parent=11 // pred_region
          _
        $region28: #{tpu_custom_call.1} parent=11 // pred_fallthru
          _
        // Predicated region
        $region29: #{tpu_custom_call.1} parent=11 // pred_check
          %p235 = pneg %p151
        $region30: #{tpu_custom_call.1} parent=11 // pred_check_branch
          %237 = sbr.rel (%p235) target = $region32
        $region31: #{tpu_custom_call.1} parent=11 // pred_region
          %s239 = ssub.s32 1024, 1024
          %240 = vsyncadd [#allocation6], %s239
          %s241 = sshll.u32 [#allocation7], 4
          %s242 = int_to_ptr.vmem [resolvable:$true] %s241
          %247 = dma.hbm_to_vmem [thread:$0]  %s5, 1024, %s242, [#allocation6], 64, 64, 4
        $region32: #{tpu_custom_call.1} parent=11 // pred_fallthru
          _
        // Predicated region
        $region33: #{tpu_custom_call.1} parent=11 // pred_check
          %p248 = pneg %p172
        $region34: #{tpu_custom_call.1} parent=11 // pred_check_branch
          %250 = sbr.rel (%p248) target = $region36
        $region35: #{tpu_custom_call.1} parent=11 // pred_region
          _
        $region36: #{tpu_custom_call.1} parent=11 // pred_fallthru
          _
      $region12: #{tpu_custom_call.1} parent=5 // pred_fallthru
        _
      %p251 = scmp.lt.s32.totalorder %s20, 2
      // Predicated region
      $region37: #{tpu_custom_call.1} parent=5 // pred_check
        %p252 = pneg %p251
      $region38: #{tpu_custom_call.1} parent=5 // pred_check_branch
        %254 = sbr.rel (%p252) target = $region40
      $region39: #{tpu_custom_call.1} parent=5 // pred_region
        // Predicated region
        $region41: #{tpu_custom_call.1} parent=39 // pred_check
          %p255 = pneg %p40
        $region42: #{tpu_custom_call.1} parent=39 // pred_check_branch
          %257 = sbr.rel (%p255) target = $region44
        $region43: #{tpu_custom_call.1} parent=39 // pred_region
          %s258 = sand.u32 %s30, 1
          %s259 = scalar_lea.sflag [#allocation3], %s258
          %s260 = sand.u32 %s30, 1
          %s261 = smul.addr %s260, 8
          %s262 = scalar_lea.vmem [#allocation2], %s261
          %s264 = ssub.s32 128, 128
          %265 = vsyncadd %s259, %s264
          %s266 = smul.addr %s20, 128
          %s267 = scalar_lea.hbm %s0, %s266
          %s269 = sshll.u32 %s262, 4
          %s270 = int_to_ptr.vmem [resolvable:$true] %s269
          %272 = dma.hbm_to_vmem [thread:$0]  %s267, 128, %s270, %s259
        $region44: #{tpu_custom_call.1} parent=39 // pred_fallthru
          _
      $region40: #{tpu_custom_call.1} parent=5 // pred_fallthru
        _
      %p273 = scmp.le.s32.totalorder 1, %s20
      %p274 = scmp.lt.s32.totalorder %s20, 3
      %p275 = pnand %p273, %p274
      %p276 = pneg %p275
      // Predicated region
      $region45: #{tpu_custom_call.1} parent=5 // pred_check
        _
      $region46: #{tpu_custom_call.1} parent=5 // pred_check_branch
        %278 = sbr.rel (%p275) target = $region48
      $region47: #{tpu_custom_call.1} parent=5 // pred_region
        %s279 = ssub.s32 %s20, 1
        %s280 = sand.u32 %s33, 1
        %s281 = scalar_lea.sflag [#allocation3], %s280
        %s282 = sand.u32 %s33, 1
        %s283 = smul.addr %s282, 8
        %s284 = scalar_lea.vmem [#allocation2], %s283
        // Predicated region
        $region49: #{tpu_custom_call.1} parent=47 // pred_check
          %p285 = pneg %p46
        $region50: #{tpu_custom_call.1} parent=47 // pred_check_branch
          %287 = sbr.rel (%p285) target = $region52
        $region51: #{tpu_custom_call.1} parent=47 // pred_region
          %288 = dma.done %s281, 128
        $region52: #{tpu_custom_call.1} parent=47 // pred_fallthru
          _
        // Predicated region
        $region53: #{tpu_custom_call.1} parent=47 // pred_check
          %p289 = pneg %p109
        $region54: #{tpu_custom_call.1} parent=47 // pred_check_branch
          %291 = sbr.rel (%p289) target = $region56
        $region55: #{tpu_custom_call.1} parent=47 // pred_region
          %292 = dma.done [#allocation6], 1024
        $region56: #{tpu_custom_call.1} parent=47 // pred_fallthru
          _
        // Predicated region
        $region57: #{tpu_custom_call.1} parent=47 // pred_check
          %p293 = pneg %p151
        $region58: #{tpu_custom_call.1} parent=47 // pred_check_branch
          %295 = sbr.rel (%p293) target = $region60
        $region59: #{tpu_custom_call.1} parent=47 // pred_region
          %296 = dma.done [#allocation6], 1024
        $region60: #{tpu_custom_call.1} parent=47 // pred_fallthru
          _
        %s297 = sand.u32 %s33, 1
        %s298 = scalar_lea.sflag [#allocation3], %s297
        %s299 = sand.u32 %s33, 1
        %s300 = smul.addr %s299, 8
        %s301 = scalar_lea.vmem [#allocation2], %s300
        %p302 = pneg %p46
        %p303 = pneg %p43
        %p304 = pneg %p67
        %p305 = pneg %p64
        %p306 = pneg %p88
        %p307 = pneg %p85
        %p308 = pneg %p109
        %p309 = pneg %p106
        %p310 = pneg %p130
        %p311 = pneg %p127
        %p312 = pneg %p151
        %p313 = pneg %p148
        %p314 = pneg %p172
        %p315 = pneg %p169
        %p316 = pneg %p198
        %p317 = pneg %p195
        %s318 = sand.u32 %s185, 1
        %s319 = scalar_lea.sflag [#allocation4], %s318
        %s320 = sand.u32 %s185, 1
        %s321 = smul.addr %s320, 8
        %s322 = scalar_lea.vmem [#allocation8], %s321
        %v325 = vld [vmem:[%s284] sm:$0xff]
        %326 = vadd.xlane.f32.xlu0 %v325
        %v327 = vpop.xlane.xlu0 %326
        %v328 = vmul.f32 %v327, 0.03125
        %v329 = vmul.f32 %v325, %v325
        %330 = vadd.xlane.f32.xlu0 %v329
        %v331 = vpop.xlane.xlu0 %330
        %v332 = vmul.f32 %v331, 0.03125
        %v333 = vmul.f32 %v328, %v328
        %v334 = vsub.f32 %v332, %v333
        %v335 = vsub.f32 %v325, %v328
        %v336 = vadd.f32 %v334, 1e-05
        %v337 = vrsqrt.pop %v336
        %v338 = vmul.f32 %v335, %v337
        %v339 = vld [vmem:[%s1] sm:$0x1]
        %v341 = vlaneseq
        %v342 = vshrl.u32 %v341, 7
        %v343 = vsub.s32 0, %v342
        %v344 = vrot.slane %v339, %v343
        %v346 = vmul.f32 %v338, %v344
        %v347 = vld [vmem:[%s2] sm:$0x1]
        %v349 = vlaneseq
        %v350 = vshrl.u32 %v349, 7
        %v351 = vsub.s32 0, %v350
        %v352 = vrot.slane %v347, %v351
        %v354 = vadd.f32 %v346, %v352
        %v355 = vpack.c.bf16 %v354, %v354
        %v356 = vld [vmem:[#allocation5] sm:$0xf]
        %v357 = vld [vmem:[#allocation5 + $0x4] sm:$0xf]
        %v358 = vld [vmem:[#allocation5 + $0x8] sm:$0xf]
        %v359 = vld [vmem:[#allocation5 + $0xc] sm:$0xf]
        %v360 = vld [vmem:[#allocation5 + $0x10] sm:$0xf]
        %v361 = vld [vmem:[#allocation5 + $0x14] sm:$0xf]
        %v362 = vld [vmem:[#allocation5 + $0x18] sm:$0xf]
        %v363 = vld [vmem:[#allocation5 + $0x1c] sm:$0xf]
        %v364 = vld [vmem:[#allocation5 + $0x20] sm:$0xf]
        %v365 = vld [vmem:[#allocation5 + $0x24] sm:$0xf]
        %v366 = vld [vmem:[#allocation5 + $0x28] sm:$0xf]
        %v367 = vld [vmem:[#allocation5 + $0x2c] sm:$0xf]
        %v368 = vld [vmem:[#allocation5 + $0x30] sm:$0xf]
        %v369 = vld [vmem:[#allocation5 + $0x34] sm:$0xf]
        %v370 = vld [vmem:[#allocation5 + $0x38] sm:$0xf]
        %v371 = vld [vmem:[#allocation5 + $0x3c] sm:$0xf]
        %v372 = vld [vmem:[%s4] sm:$0x1]
        %v374 = vlaneseq
        %v375 = vshrl.u32 %v374, 7
        %v376 = vsub.s32 0, %v375
        %v377 = vrot.slane %v372, %v376
        %v395 = vunpack.c.l.b16 %v356
        %v396 = vunpack.c.l.b16 %v357
        %v397 = vunpack.c.l.b16 %v358
        %v398 = vunpack.c.l.b16 %v359
        %v399 = vunpack.c.l.b16 %v360
        %v400 = vunpack.c.l.b16 %v361
        %v401 = vunpack.c.l.b16 %v362
        %v402 = vunpack.c.l.b16 %v363
        %v403 = vunpack.c.l.b16 %v364
        %v404 = vunpack.c.l.b16 %v365
        %v405 = vunpack.c.l.b16 %v366
        %v406 = vunpack.c.l.b16 %v367
        %v407 = vunpack.c.l.b16 %v368
        %v408 = vunpack.c.l.b16 %v369
        %v409 = vunpack.c.l.b16 %v370
        %v410 = vunpack.c.l.b16 %v371
        %v411 = vpack.c.b16 %v396, %v395
        %v412 = vpack.c.b16 %v398, %v397
        %v413 = vpack.c.b16 %v400, %v399
        %v414 = vpack.c.b16 %v402, %v401
        %v415 = vpack.c.b16 %v404, %v403
        %v416 = vpack.c.b16 %v406, %v405
        %v417 = vpack.c.b16 %v408, %v407
        %v418 = vpack.c.b16 %v410, %v409
        %427 = vmatprep.subr.bf16.mxu0 0
        %428 = vmatpush1.bf16.msra.mxu0 %v411
        %429 = vmatprep.subr.bf16.mxu0 0
        %430 = vmatpush1.bf16.msra.mxu0 %v412
        %431 = vmatprep.subr.bf16.mxu0 0
        %432 = vmatpush1.bf16.msra.mxu0 %v413
        %433 = vmatprep.subr.bf16.mxu0 0
        %434 = vmatpush1.bf16.msra.mxu0 %v414
        %435 = vmatprep.subr.bf16.mxu0 0
        %436 = vmatpush1.bf16.msra.mxu0 %v415
        %437 = vmatprep.subr.bf16.mxu0 0
        %438 = vmatpush1.bf16.msra.mxu0 %v416
        %439 = vmatprep.subr.bf16.mxu0 0
        %440 = vmatpush1.bf16.msra.mxu0 %v417
        %441 = vmatprep.subr.bf16.mxu0 0
        %442 = vmatpush1.bf16.msra.mxu0 %v418
        %443 = vmatprep.subr.bf16.mxu0 0
        %444 = vmatpush1.bf16.msra.mxu0 0
        %445 = vmatprep.subr.bf16.mxu0 0
        %446 = vmatpush1.bf16.msra.mxu0 0
        %447 = vmatprep.subr.bf16.mxu0 0
        %448 = vmatpush1.bf16.msra.mxu0 0
        %449 = vmatprep.subr.bf16.mxu0 0
        %450 = vmatpush1.bf16.msra.mxu0 0
        %451 = vmatprep.subr.bf16.mxu0 0
        %452 = vmatpush1.bf16.msra.mxu0 0
        %453 = vmatprep.subr.bf16.mxu0 0
        %454 = vmatpush1.bf16.msra.mxu0 0
        %455 = vmatprep.subr.bf16.mxu0 0
        %456 = vmatpush1.bf16.msra.mxu0 0
        %457 = vmatprep.subr.bf16.mxu0 0
        %458 = vmatpush1.bf16.msra.mxu0 0
        %459 = vmatprep.mubr.bf16.mxu0 0
        %460 = vmatmul.mubr.bf16.gmra.mrb[0].mxu0 %v355
        %v461 = vpop.f32.mrb[0].mxu0
        %v462 = vadd.f32 %v377, %v461
        %v463 = vpop.f32.mrb[0].mxu0
        %v464 = vpop.f32.mrb[0].mxu0
        %v465 = vpop.f32.mrb[0].mxu0
        %466 = vdwg.mxu0
        %v467 = vpack.c.bf16 %v462, %v462
        %v468 = vxor.u32 %v467, 2147516416
        %v470 = vmul.bf16 %v468, 1069105081
        %v471 = vpow.bf16.pop %v470
        %v472 = vadd.bf16 %v471, 1065369472
        %v473 = vrcp.bf16.pop %v472
        %v474 = vmul.bf16 1065369472, %v473
        %v475 = vmul.bf16 %v467, %v474
        %v476 = vld [vmem:[#allocation7] sm:$0xf]
        %v477 = vld [vmem:[#allocation7 + $0x4] sm:$0xf]
        %v478 = vld [vmem:[#allocation7 + $0x8] sm:$0xf]
        %v479 = vld [vmem:[#allocation7 + $0xc] sm:$0xf]
        %v480 = vld [vmem:[#allocation7 + $0x10] sm:$0xf]
        %v481 = vld [vmem:[#allocation7 + $0x14] sm:$0xf]
        %v482 = vld [vmem:[#allocation7 + $0x18] sm:$0xf]
        %v483 = vld [vmem:[#allocation7 + $0x1c] sm:$0xf]
        %v484 = vld [vmem:[#allocation7 + $0x20] sm:$0xf]
        %v485 = vld [vmem:[#allocation7 + $0x24] sm:$0xf]
        %v486 = vld [vmem:[#allocation7 + $0x28] sm:$0xf]
        %v487 = vld [vmem:[#allocation7 + $0x2c] sm:$0xf]
        %v488 = vld [vmem:[#allocation7 + $0x30] sm:$0xf]
        %v489 = vld [vmem:[#allocation7 + $0x34] sm:$0xf]
        %v490 = vld [vmem:[#allocation7 + $0x38] sm:$0xf]
        %v491 = vld [vmem:[#allocation7 + $0x3c] sm:$0xf]
        %v492 = vld [vmem:[%s6] sm:$0x1]
        %v494 = vlaneseq
        %v495 = vshrl.u32 %v494, 7
        %v496 = vsub.s32 0, %v495
        %v497 = vrot.slane %v492, %v496
        %v515 = vunpack.c.l.b16 %v476
        %v516 = vunpack.c.l.b16 %v477
        %v517 = vunpack.c.l.b16 %v478
        %v518 = vunpack.c.l.b16 %v479
        %v519 = vunpack.c.l.b16 %v480
        %v520 = vunpack.c.l.b16 %v481
        %v521 = vunpack.c.l.b16 %v482
        %v522 = vunpack.c.l.b16 %v483
        %v523 = vunpack.c.l.b16 %v484
        %v524 = vunpack.c.l.b16 %v485
        %v525 = vunpack.c.l.b16 %v486
        %v526 = vunpack.c.l.b16 %v487
        %v527 = vunpack.c.l.b16 %v488
        %v528 = vunpack.c.l.b16 %v489
        %v529 = vunpack.c.l.b16 %v490
        %v530 = vunpack.c.l.b16 %v491
        %v531 = vpack.c.b16 %v516, %v515
        %v532 = vpack.c.b16 %v518, %v517
        %v533 = vpack.c.b16 %v520, %v519
        %v534 = vpack.c.b16 %v522, %v521
        %v535 = vpack.c.b16 %v524, %v523
        %v536 = vpack.c.b16 %v526, %v525
        %v537 = vpack.c.b16 %v528, %v527
        %v538 = vpack.c.b16 %v530, %v529
        %547 = vmatprep.subr.bf16.mxu0 0
        %548 = vmatpush1.bf16.msra.mxu0 %v531
        %549 = vmatprep.subr.bf16.mxu0 0
        %550 = vmatpush1.bf16.msra.mxu0 %v532
        %551 = vmatprep.subr.bf16.mxu0 0
        %552 = vmatpush1.bf16.msra.mxu0 %v533
        %553 = vmatprep.subr.bf16.mxu0 0
        %554 = vmatpush1.bf16.msra.mxu0 %v534
        %555 = vmatprep.subr.bf16.mxu0 0
        %556 = vmatpush1.bf16.msra.mxu0 %v535
        %557 = vmatprep.subr.bf16.mxu0 0
        %558 = vmatpush1.bf16.msra.mxu0 %v536
        %559 = vmatprep.subr.bf16.mxu0 0
        %560 = vmatpush1.bf16.msra.mxu0 %v537
        %561 = vmatprep.subr.bf16.mxu0 0
        %562 = vmatpush1.bf16.msra.mxu0 %v538
        %563 = vmatprep.subr.bf16.mxu0 0
        %564 = vmatpush1.bf16.msra.mxu0 0
        %565 = vmatprep.subr.bf16.mxu0 0
        %566 = vmatpush1.bf16.msra.mxu0 0
        %567 = vmatprep.subr.bf16.mxu0 0
        %568 = vmatpush1.bf16.msra.mxu0 0
        %569 = vmatprep.subr.bf16.mxu0 0
        %570 = vmatpush1.bf16.msra.mxu0 0
        %571 = vmatprep.subr.bf16.mxu0 0
        %572 = vmatpush1.bf16.msra.mxu0 0
        %573 = vmatprep.subr.bf16.mxu0 0
        %574 = vmatpush1.bf16.msra.mxu0 0
        %575 = vmatprep.subr.bf16.mxu0 0
        %576 = vmatpush1.bf16.msra.mxu0 0
        %577 = vmatprep.subr.bf16.mxu0 0
        %578 = vmatpush1.bf16.msra.mxu0 0
        %579 = vmatprep.mubr.bf16.mxu0 0
        %580 = vmatmul.mubr.bf16.gmra.mrb[0].mxu0 %v475
        %v581 = vpop.f32.mrb[0].mxu0
        %v582 = vadd.f32 %v497, %v581
        %v583 = vpop.f32.mrb[0].mxu0
        %v584 = vpop.f32.mrb[0].mxu0
        %v585 = vpop.f32.mrb[0].mxu0
        %586 = vdwg.mxu0
        %587 = vst [vmem:[%s322] sm:$0xff] %v582
        %s588 = sand.u32 %s185, 1
        %s589 = scalar_lea.sflag [#allocation4], %s588
        %s590 = sand.u32 %s185, 1
        %s591 = smul.addr %s590, 8
        %s592 = scalar_lea.vmem [#allocation8], %s591
        // Predicated region
        $region61: #{tpu_custom_call.1} parent=47 // pred_check
          %p593 = pneg %p195
        $region62: #{tpu_custom_call.1} parent=47 // pred_check_branch
          %595 = sbr.rel (%p593) target = $region64
        $region63: #{tpu_custom_call.1} parent=47 // pred_region
          %s597 = ssub.s32 128, 128
          %598 = vsyncadd %s589, %s597
          %s599 = smul.addr %s25, 128
          %s600 = scalar_lea.hbm %s7, %s599
          %s602 = sshll.u32 %s592, 4
          %s603 = int_to_ptr.vmem [resolvable:$true] %s602
          %605 = dma.vmem_to_hbm [thread:$0]  %s603, 128, %s600, %s589
        $region64: #{tpu_custom_call.1} parent=47 // pred_fallthru
          _
      $region48: #{tpu_custom_call.1} parent=5 // pred_fallthru
        _
      %p606 = scmp.le.s32.totalorder 2, %s20
      // Predicated region
      $region65: #{tpu_custom_call.1} parent=5 // pred_check
        %p607 = pneg %p606
      $region66: #{tpu_custom_call.1} parent=5 // pred_check_branch
        %609 = sbr.rel (%p607) target = $region68
      $region67: #{tpu_custom_call.1} parent=5 // pred_region
        %s610 = ssub.s32 %s20, 2
        // Predicated region
        $region69: #{tpu_custom_call.1} parent=67 // pred_check
          %p611 = pneg %p201
        $region70: #{tpu_custom_call.1} parent=67 // pred_check_branch
          %613 = sbr.rel (%p611) target = $region72
        $region71: #{tpu_custom_call.1} parent=67 // pred_region
          %s614 = sand.u32 %s186, 1
          %s615 = scalar_lea.sflag [#allocation4], %s614
          %s616 = sand.u32 %s186, 1
          %s617 = smul.addr %s616, 8
          %s618 = scalar_lea.vmem [#allocation8], %s617
          %619 = dma.done %s615, 128
        $region72: #{tpu_custom_call.1} parent=67 // pred_fallthru
          _
      $region68: #{tpu_custom_call.1} parent=5 // pred_fallthru
        _
    $region6: #{tpu_custom_call.1} parent=1 // loop_footer
      %s24 = sadd.s32 1, %s20
    $region7: #{tpu_custom_call.1} parent=1 // loop_footer_branch
      %19 = sbr.rel target = $region3
    $region8: #{tpu_custom_call.1} parent=1 // loop_exit
      _
    %620 = vsyncpa [#allocation3], 1
    %s621 = scalar_lea.sflag [#allocation3], 1
    %622 = vsyncpa %s621, 1
    %623 = vsyncpa [#allocation6], 1
    %624 = vsyncpa [#allocation4], 1
    %s625 = scalar_lea.sflag [#allocation4], 1
    %626 = vsyncpa %s625, 1

</llo_original>
